<compile_context>
chip_gen: v5e
topology: v5e:2x2
jax: 0.10.0
libtpu: 0.0.40
codegen_flags: <defaults>
</compile_context>

<pallas_src>
import functools

import jax
import jax.numpy as jnp
from jax import lax
from jax.experimental import pallas as pl
from jax.experimental.pallas import tpu as pltpu


# ---------------------------------------------------------------------------
# Fused forward kernel (whole forward, gridless, everything VMEM-resident)
# ---------------------------------------------------------------------------
def _fused_forward_kernel(scal_ref,      # SMEM (3,) f32: [eps1, eps2, b3]
                          a_ref,         # (N, N)   bf16  raw A[v, u] = w(u -> v)
                          x0_ref,        # (N, C)   bf16  initial node embeddings
                          invdeg_ref,    # (N, 1)   f32   1 / max(in_degree, 1)
                          wg1_ref,       # (C, H)   f32   GIN lin1 (transposed)
                          wg2_ref,       # (H, H)   f32   GIN lin2 (transposed)
                          vec_ref,       # (5, Wmax) f32  rows = [b_g1, b_g2, b1, b2, w3]
                          ids_ref,       # (3M, 1)  int32 stacked [i1; i2; ctx] gather ids
                          w1t_ref,       # (3H, H1) f32   context-MLP W1 (transposed)
                          w2t_ref,       # (H1, H2) f32   context-MLP W2 (transposed)
                          o_ref,         # (B, 2)   f32   [num | den]
                          *, n_nodes, m_rows, k_ctx, bsz, h, h1, h2):
    a = a_ref[...]                       # bf16, used by both GIN layers
    inv_deg = invdeg_ref[...]            # f32 (N, 1)

    bg1 = vec_ref[0:1, 0:h]              # (1, H)
    bg2 = vec_ref[1:2, 0:h]              # (1, H)
    b1 = vec_ref[2:3, 0:h1]              # (1, H1)
    b2 = vec_ref[3:4, 0:h2]              # (1, H2)
    w3 = vec_ref[4:5, 0:h2]              # (1, H2)

    # ----- GIN layer 1: h = (1+eps1)*x + (A @ x) * inv_deg ; x = relu(Lin1(h))
    x0 = x0_ref[...]                                             # bf16 (N, C)
    agg = jnp.dot(a, x0, preferred_element_type=jnp.float32) * inv_deg
    hh = (1.0 + scal_ref[0]) * x0.astype(jnp.float32) + agg      # f32 elementwise
    x = jnp.maximum(
        jnp.dot(hh, wg1_ref[...], preferred_element_type=jnp.float32) + bg1, 0.0)

    # ----- GIN layer 2 (no ReLU after the last layer)
    agg = jnp.dot(a, x.astype(jnp.bfloat16),
                  preferred_element_type=jnp.float32) * inv_deg
    hh = (1.0 + scal_ref[1]) * x + agg
    x = jnp.dot(hh, wg2_ref[...], preferred_element_type=jnp.float32) + bg2

    # ----- x[0] = 0 (row mask, pure VPU)
    row_ids = lax.broadcasted_iota(jnp.int32, (n_nodes, 1), 0)
    x = x * (row_ids != 0).astype(jnp.float32)

    # ----- single stacked one-hot gather: [x[i1]; x[i2]; x[ctx]] in one MXU dot
    ids = ids_ref[...]                                           # (3M, 1) int32
    col = lax.broadcasted_iota(jnp.int32, (3 * m_rows, n_nodes), 1)
    g = (ids == col).astype(jnp.float32)                         # (3M, N)
    xg = jnp.dot(g, x, preferred_element_type=jnp.float32)       # (3M, H)
    x1 = xg[0:m_rows]
    x2 = xg[m_rows:2 * m_rows]
    x3 = xg[2 * m_rows:3 * m_rows]

    # ----- context MLP; W1 applied as aligned slices of the single (3H, H1) operand
    y = (jnp.dot(x1, w1t_ref[0:h, :], preferred_element_type=jnp.float32)
         + jnp.dot(x2, w1t_ref[h:2 * h, :], preferred_element_type=jnp.float32)
         + jnp.dot(x3, w1t_ref[2 * h:3 * h, :], preferred_element_type=jnp.float32)
         + b1)
    y = jnp.maximum(y, 0.0)                                      # (M, H1)
    y = jnp.maximum(
        jnp.dot(y, w2t_ref[...], preferred_element_type=jnp.float32) + b2, 0.0)

    # ----- per-(pair, ctx) score: VPU multiply + lane reduce against the w3 row
    s = jnp.sum(y * w3, axis=1, keepdims=True) + scal_ref[2]     # (M, 1)
    mask = (ids[2 * m_rows:3 * m_rows] > 0).astype(jnp.float32)  # (M, 1) ctx > 0

    # ----- masked sum over the K context entries: ONE (B, M) @ (M, 2) matmul.
    # rhs columns = [s*mask | mask] built with an iota select (no concatenate).
    c2 = lax.broadcasted_iota(jnp.int32, (m_rows, 2), 1)
    rhs2 = jnp.where(c2 == 0, s * mask, mask)                    # (M, 2)
    r = lax.broadcasted_iota(jnp.int32, (bsz, m_rows), 0)
    c = lax.broadcasted_iota(jnp.int32, (bsz, m_rows), 1)
    lo = r * k_ctx
    sel = ((c >= lo) & (c < lo + k_ctx)).astype(jnp.float32)     # (B, M)
    o_ref[...] = jnp.dot(sel, rhs2, preferred_element_type=jnp.float32)   # (B, 2)


# ---------------------------------------------------------------------------
# Wrapper: cheap host-side prep (transposes, packing, O(N)/O(B*L) index ops)
# ---------------------------------------------------------------------------
def gin_mlp2_forward(ndata, A, deg, gin_params, mlp_params, indices):
    n, c_in = ndata.shape
    (w_g1, b_g1, eps1), (w_g2, b_g2, eps2) = gin_params
    w1, b1, w2, b2, w3, b3 = mlp_params
    h = w_g1.shape[0]
    h1 = w1.shape[0]
    h2 = w2.shape[0]
    bsz, length = indices.shape
    k = length - 3
    m = bsz * k

    # bf16 MXU operands for the A@x path; f32 everywhere else.
    a_bf = A.astype(jnp.bfloat16)
    x0_bf = ndata.astype(jnp.bfloat16)
    # O(N) reciprocal degree (guard deg == 0); replaces the per-call N^2 normalize.
    inv_deg = (1.0 / jnp.maximum(deg, 1.0)).astype(jnp.float32)

    # scalars in SMEM: eps1, eps2, b3
    scal = jnp.stack([jnp.asarray(eps1, jnp.float32),
                      jnp.asarray(eps2, jnp.float32),
                      jnp.asarray(b3.reshape(()), jnp.float32)])

    # pre-transposed weights
    wg1t = w_g1.T.astype(jnp.float32)          # (C, H)
    wg2t = w_g2.T.astype(jnp.float32)          # (H, H)
    w1t = w1.T.astype(jnp.float32)             # (3H, H1)
    w2t = w2.T.astype(jnp.float32)             # (H1, H2)

    # pack the four bias rows + w3 row into one (5, Wmax) operand
    wmax = max(h, h1, h2)

    def _row(v):
        v = jnp.asarray(v, jnp.float32).reshape(1, -1)
        return jnp.pad(v, ((0, 0), (0, wmax - v.shape[1])))

    vec_pack = jnp.concatenate(
        [_row(b_g1), _row(b_g2), _row(b1), _row(b2), _row(w3)], axis=0)

    # stacked gather ids [i1; i2; ctx], each b-major / k-minor (matches pooling)
    i1 = jnp.repeat(indices[:, 0:1], k, axis=1).reshape(m, 1)
    i2 = jnp.repeat(indices[:, 1:2], k, axis=1).reshape(m, 1)
    ic = indices[:, 3:].reshape(m, 1)
    ids = jnp.concatenate([i1, i2, ic], axis=0).astype(jnp.int32)   # (3M, 1)

    kernel = functools.partial(_fused_forward_kernel,
                               n_nodes=n, m_rows=m, k_ctx=k, bsz=bsz,
                               h=h, h1=h1, h2=h2)

    vmem = lambda: pl.BlockSpec(memory_space=pltpu.VMEM)

    nd = pl.pallas_call(
        kernel,
        out_shape=jax.ShapeDtypeStruct((bsz, 2), jnp.float32),
        in_specs=[
            pl.BlockSpec(memory_space=pltpu.SMEM),   # eps1, eps2, b3
            vmem(),                                  # A (bf16)
            vmem(),                                  # x0 (bf16)
            vmem(),                                  # inv_deg
            vmem(), vmem(),                          # GIN lin1 / lin2 weights
            vmem(),                                  # packed bias / w3 rows
            vmem(),                                  # stacked gather ids
            vmem(), vmem(),                          # context-MLP W1, W2
        ],
        out_specs=pl.BlockSpec(memory_space=pltpu.VMEM),
        compiler_params=pltpu.CompilerParams(vmem_limit_bytes=32 * 1024 * 1024),
    )(scal, a_bf, x0_bf, inv_deg, wg1t, wg2t, vec_pack, ids, w1t, w2t)

    # tiny (B, 2) epilogue: masked mean = num / max(den, 1)
    sims = nd[:, 0:1] / jnp.maximum(nd[:, 1:2], 1.0)
    return sims


# ---------------------------------------------------------------------------
# Pure-JAX f32 reference (same math) for a sanity check
# ---------------------------------------------------------------------------
def _reference(ndata, A, deg, gin_params, mlp_params, indices):
    x = ndata
    (w_g1, b_g1, eps1), (w_g2, b_g2, eps2) = gin_params
    x = jnp.maximum(((1 + eps1) * x + (A @ x) / deg) @ w_g1.T + b_g1, 0.0)
    x = ((1 + eps2) * x + (A @ x) / deg) @ w_g2.T + b_g2
    x = x.at[0].set(0.0)
    bsz, length = indices.shape
    k = length - 3
    ctx = indices[:, 3:]
    i1 = jnp.repeat(indices[:, 0:1], k, axis=1).reshape(-1)
    i2 = jnp.repeat(indices[:, 1:2], k, axis=1).reshape(-1)
    i3 = ctx.reshape(-1)
    y = jnp.concatenate([x[i1], x[i2], x[i3]], axis=1)
    w1, b1, w2, b2, w3, b3 = mlp_params
    y = jnp.maximum(y @ w1.T + b1, 0.0)
    y = jnp.maximum(y @ w2.T + b2, 0.0)
    y = (y @ w3.T + b3).reshape(bsz, k)
    mask = (ctx > 0).astype(jnp.float32)
    sims = jnp.sum(y * mask, axis=1) / jnp.sum(mask, axis=1)
    return sims.reshape(-1, 1)


if __name__ == "__main__":
    key = jax.random.PRNGKey(0)
    N = 32        # graph nodes
    C_IN = 16     # in_channels
    H = 32        # hidden_channels
    B = 2         # batch of index rows
    L = 11        # indices row length -> K = L - 3 = 8 context entries (M = 16)

    keys = jax.random.split(key, 16)

    # node embeddings (init_emb='random' -> nn.Embedding weight)
    ndata = jax.random.normal(keys[0], (N, C_IN), jnp.float32) * 0.1

    # dense weighted adjacency A[v, u] = w(u -> v); guarantee >= 1 in-edge per node
    edge_mask = (jax.random.uniform(keys[1], (N, N)) < 0.25).astype(jnp.float32)
    edge_mask = edge_mask.at[jnp.arange(N), (jnp.arange(N) + 1) % N].set(1.0)
    edge_w = jax.random.uniform(keys[2], (N, N), jnp.float32, 0.5, 1.5)
    A = edge_mask * edge_w
    deg = jnp.sum(edge_mask, axis=1, keepdims=True)   # in-degree (mean aggregator)

    # GIN linears: lin1 (C_IN -> H), lin2 (H -> H); eps init = 0 (learn_eps=True)
    w_g1 = jax.random.normal(keys[3], (H, C_IN), jnp.float32) * 0.1
    b_g1 = jax.random.normal(keys[4], (H,), jnp.float32) * 0.01
    w_g2 = jax.random.normal(keys[5], (H, H), jnp.float32) * 0.1
    b_g2 = jax.random.normal(keys[6], (H,), jnp.float32) * 0.01
    gin_params = ((w_g1, b_g1, jnp.float32(0.0)),
                  (w_g2, b_g2, jnp.float32(0.0)))

    # mlp_layers_context: Linear(3H, H), Linear(H, H//2), Linear(H//2, 1)
    w1 = jax.random.normal(keys[7], (H, 3 * H), jnp.float32) * 0.1
    b1 = jax.random.normal(keys[8], (H,), jnp.float32) * 0.01
    w2 = jax.random.normal(keys[9], (H // 2, H), jnp.float32) * 0.1
    b2 = jax.random.normal(keys[10], (H // 2,), jnp.float32) * 0.01
    w3 = jax.random.normal(keys[11], (1, H // 2), jnp.float32) * 0.1
    b3 = jax.random.normal(keys[12], (1,), jnp.float32) * 0.01
    mlp_params = (w1, b1, w2, b2, w3, b3)

    # indices: [:, :2] ingredient pair, [:, 2] unused, [:, 3:] context ids (0 = pad)
    indices = jax.random.randint(keys[13], (B, L), 0, N, dtype=jnp.int32)
    indices = indices.at[:, :2].set(
        jax.random.randint(keys[14], (B, 2), 1, N, dtype=jnp.int32))
    indices = indices.at[:, 3].set(jnp.maximum(indices[:, 3], 1))  # norm > 0
    indices = indices.at[:, L - 1].set(0)                          # exercise padding mask

    sims = gin_mlp2_forward(ndata, A, deg, gin_params, mlp_params, indices)
    sims = jax.block_until_ready(sims)

    ref = _reference(ndata, A, deg, gin_params, mlp_params, indices)
    assert sims.shape == (B, 1), sims.shape
    # bf16 A / x on the MXU path -> looser tolerance vs the f32 reference
    assert jnp.allclose(sims, ref, rtol=5e-2, atol=5e-3), (sims, ref)

    print("KERNEL_OK")
</pallas_src>

<mosaic_0001>
module attributes {stable_mosaic.version = 11 : i64} {
  func.func @_fused_forward_kernel(%arg0: memref<3xf32, #tpu.memory_space<smem>>, %arg1: memref<32x32xbf16, #tpu.memory_space<vmem>>, %arg2: memref<32x16xbf16, #tpu.memory_space<vmem>>, %arg3: memref<32x1xf32, #tpu.memory_space<vmem>>, %arg4: memref<16x32xf32, #tpu.memory_space<vmem>>, %arg5: memref<32x32xf32, #tpu.memory_space<vmem>>, %arg6: memref<5x32xf32, #tpu.memory_space<vmem>>, %arg7: memref<48x1xi32, #tpu.memory_space<vmem>>, %arg8: memref<96x32xf32, #tpu.memory_space<vmem>>, %arg9: memref<32x16xf32, #tpu.memory_space<vmem>>, %arg10: memref<2x2xf32, #tpu.memory_space<vmem>>) attributes {dimension_semantics = [], scalar_prefetch = 0 : i64, scratch_operands = 0 : i64, tpu.core_type = #tpu.core_type<tc>} {
    %c0 = arith.constant 0 : index
    %c0_0 = arith.constant 0 : index
    %0 = vector.load %arg1[%c0, %c0_0] : memref<32x32xbf16, #tpu.memory_space<vmem>>, vector<32x32xbf16>
    %c0_1 = arith.constant 0 : index
    %c0_2 = arith.constant 0 : index
    %1 = vector.load %arg3[%c0_1, %c0_2] : memref<32x1xf32, #tpu.memory_space<vmem>>, vector<32x1xf32>
    %c0_3 = arith.constant 0 : index
    %c0_4 = arith.constant 0 : index
    %2 = vector.load %arg6[%c0_3, %c0_4] : memref<5x32xf32, #tpu.memory_space<vmem>>, vector<1x32xf32>
    %c1 = arith.constant 1 : index
    %c0_5 = arith.constant 0 : index
    %3 = vector.load %arg6[%c1, %c0_5] : memref<5x32xf32, #tpu.memory_space<vmem>>, vector<1x32xf32>
    %c2 = arith.constant 2 : index
    %c0_6 = arith.constant 0 : index
    %4 = vector.load %arg6[%c2, %c0_6] : memref<5x32xf32, #tpu.memory_space<vmem>>, vector<1x32xf32>
    %c3 = arith.constant 3 : index
    %c0_7 = arith.constant 0 : index
    %5 = vector.load %arg6[%c3, %c0_7] : memref<5x32xf32, #tpu.memory_space<vmem>>, vector<1x16xf32>
    %c4 = arith.constant 4 : index
    %c0_8 = arith.constant 0 : index
    %6 = vector.load %arg6[%c4, %c0_8] : memref<5x32xf32, #tpu.memory_space<vmem>>, vector<1x16xf32>
    %c0_9 = arith.constant 0 : index
    %c0_10 = arith.constant 0 : index
    %7 = vector.load %arg2[%c0_9, %c0_10] : memref<32x16xbf16, #tpu.memory_space<vmem>>, vector<32x16xbf16>
    %cst = arith.constant dense<0.000000e+00> : vector<32x16xf32>
    %8 = tpu.matmul %0, %7, %cst {dimension_numbers = #tpu.dot_dimension_numbers<[1], [0], [0], [1], [0, 0, 1, 1], [], []>} : vector<32x32xbf16>, vector<32x16xbf16>, vector<32x16xf32> -> vector<32x16xf32>
    %9 = vector.broadcast %1 : vector<32x1xf32> to vector<32x16xf32>
    %10 = arith.mulf %8, %9 : vector<32x16xf32>
    %c0_11 = arith.constant 0 : index
    %11 = memref.load %arg0[%c0_11] : memref<3xf32, #tpu.memory_space<smem>>
    %cst_12 = arith.constant 1.000000e+00 : f32
    %12 = arith.addf %cst_12, %11 : f32
    %13 = arith.extf %7 : vector<32x16xbf16> to vector<32x16xf32>
    %14 = vector.broadcast %12 : f32 to vector<32x16xf32>
    %15 = arith.mulf %14, %13 : vector<32x16xf32>
    %16 = arith.addf %15, %10 : vector<32x16xf32>
    %c0_13 = arith.constant 0 : index
    %c0_14 = arith.constant 0 : index
    %17 = vector.load %arg4[%c0_13, %c0_14] : memref<16x32xf32, #tpu.memory_space<vmem>>, vector<16x32xf32>
    %cst_15 = arith.constant dense<0.000000e+00> : vector<32x32xf32>
    %18 = tpu.matmul %16, %17, %cst_15 {dimension_numbers = #tpu.dot_dimension_numbers<[1], [0], [0], [1], [0, 0, 1, 1], [], []>} : vector<32x16xf32>, vector<16x32xf32>, vector<32x32xf32> -> vector<32x32xf32>
    %19 = vector.broadcast %2 : vector<1x32xf32> to vector<32x32xf32>
    %20 = arith.addf %18, %19 : vector<32x32xf32>
    %cst_16 = arith.constant 0.000000e+00 : f32
    %21 = vector.broadcast %cst_16 : f32 to vector<32x32xf32>
    %22 = arith.maximumf %20, %21 : vector<32x32xf32>
    %23 = arith.truncf %22 : vector<32x32xf32> to vector<32x32xbf16>
    %cst_17 = arith.constant dense<0.000000e+00> : vector<32x32xf32>
    %24 = tpu.matmul %0, %23, %cst_17 {dimension_numbers = #tpu.dot_dimension_numbers<[1], [0], [0], [1], [0, 0, 1, 1], [], []>} : vector<32x32xbf16>, vector<32x32xbf16>, vector<32x32xf32> -> vector<32x32xf32>
    %25 = vector.broadcast %1 : vector<32x1xf32> to vector<32x32xf32>
    %26 = arith.mulf %24, %25 : vector<32x32xf32>
    %c1_18 = arith.constant 1 : index
    %27 = memref.load %arg0[%c1_18] : memref<3xf32, #tpu.memory_space<smem>>
    %cst_19 = arith.constant 1.000000e+00 : f32
    %28 = arith.addf %cst_19, %27 : f32
    %29 = vector.broadcast %28 : f32 to vector<32x32xf32>
    %30 = arith.mulf %29, %22 : vector<32x32xf32>
    %31 = arith.addf %30, %26 : vector<32x32xf32>
    %c0_20 = arith.constant 0 : index
    %c0_21 = arith.constant 0 : index
    %32 = vector.load %arg5[%c0_20, %c0_21] : memref<32x32xf32, #tpu.memory_space<vmem>>, vector<32x32xf32>
    %cst_22 = arith.constant dense<0.000000e+00> : vector<32x32xf32>
    %33 = tpu.matmul %31, %32, %cst_22 {dimension_numbers = #tpu.dot_dimension_numbers<[1], [0], [0], [1], [0, 0, 1, 1], [], []>} : vector<32x32xf32>, vector<32x32xf32>, vector<32x32xf32> -> vector<32x32xf32>
    %34 = vector.broadcast %3 : vector<1x32xf32> to vector<32x32xf32>
    %35 = arith.addf %33, %34 : vector<32x32xf32>
    %36 = tpu.iota {dimensions = array<i32: 0>} : vector<32x1xi32>
    %c0_i32 = arith.constant 0 : i32
    %37 = vector.broadcast %c0_i32 : i32 to vector<32x1xi32>
    %38 = arith.cmpi ne, %36, %37 : vector<32x1xi32>
    %39 = arith.extui %38 : vector<32x1xi1> to vector<32x1xi32>
    %40 = arith.sitofp %39 : vector<32x1xi32> to vector<32x1xf32>
    %41 = vector.broadcast %40 : vector<32x1xf32> to vector<32x32xf32>
    %42 = arith.mulf %35, %41 : vector<32x32xf32>
    %c0_23 = arith.constant 0 : index
    %c0_24 = arith.constant 0 : index
    %43 = vector.load %arg7[%c0_23, %c0_24] : memref<48x1xi32, #tpu.memory_space<vmem>>, vector<48x1xi32>
    %44 = tpu.iota {dimensions = array<i32: 1>} : vector<48x32xi32>
    %45 = vector.broadcast %43 : vector<48x1xi32> to vector<48x32xi32>
    %46 = arith.cmpi eq, %45, %44 : vector<48x32xi32>
    %47 = arith.extui %46 : vector<48x32xi1> to vector<48x32xi32>
    %48 = arith.sitofp %47 : vector<48x32xi32> to vector<48x32xf32>
    %cst_25 = arith.constant dense<0.000000e+00> : vector<48x32xf32>
    %49 = tpu.matmul %48, %42, %cst_25 {dimension_numbers = #tpu.dot_dimension_numbers<[1], [0], [0], [1], [0, 0, 1, 1], [], []>} : vector<48x32xf32>, vector<32x32xf32>, vector<48x32xf32> -> vector<48x32xf32>
    %50 = vector.extract_strided_slice %49 {offsets = [0, 0], sizes = [16, 32], strides = [1, 1]} : vector<48x32xf32> to vector<16x32xf32>
    %51 = vector.extract_strided_slice %49 {offsets = [16, 0], sizes = [16, 32], strides = [1, 1]} : vector<48x32xf32> to vector<16x32xf32>
    %52 = vector.extract_strided_slice %49 {offsets = [32, 0], sizes = [16, 32], strides = [1, 1]} : vector<48x32xf32> to vector<16x32xf32>
    %c0_26 = arith.constant 0 : index
    %c0_27 = arith.constant 0 : index
    %53 = vector.load %arg8[%c0_26, %c0_27] : memref<96x32xf32, #tpu.memory_space<vmem>>, vector<32x32xf32>
    %cst_28 = arith.constant dense<0.000000e+00> : vector<16x32xf32>
    %54 = tpu.matmul %50, %53, %cst_28 {dimension_numbers = #tpu.dot_dimension_numbers<[1], [0], [0], [1], [0, 0, 1, 1], [], []>} : vector<16x32xf32>, vector<32x32xf32>, vector<16x32xf32> -> vector<16x32xf32>
    %c32 = arith.constant 32 : index
    %c0_29 = arith.constant 0 : index
    %55 = vector.load %arg8[%c32, %c0_29] : memref<96x32xf32, #tpu.memory_space<vmem>>, vector<32x32xf32>
    %cst_30 = arith.constant dense<0.000000e+00> : vector<16x32xf32>
    %56 = tpu.matmul %51, %55, %cst_30 {dimension_numbers = #tpu.dot_dimension_numbers<[1], [0], [0], [1], [0, 0, 1, 1], [], []>} : vector<16x32xf32>, vector<32x32xf32>, vector<16x32xf32> -> vector<16x32xf32>
    %57 = arith.addf %54, %56 : vector<16x32xf32>
    %c64 = arith.constant 64 : index
    %c0_31 = arith.constant 0 : index
    %58 = vector.load %arg8[%c64, %c0_31] : memref<96x32xf32, #tpu.memory_space<vmem>>, vector<32x32xf32>
    %cst_32 = arith.constant dense<0.000000e+00> : vector<16x32xf32>
    %59 = tpu.matmul %52, %58, %cst_32 {dimension_numbers = #tpu.dot_dimension_numbers<[1], [0], [0], [1], [0, 0, 1, 1], [], []>} : vector<16x32xf32>, vector<32x32xf32>, vector<16x32xf32> -> vector<16x32xf32>
    %60 = arith.addf %57, %59 : vector<16x32xf32>
    %61 = vector.broadcast %4 : vector<1x32xf32> to vector<16x32xf32>
    %62 = arith.addf %60, %61 : vector<16x32xf32>
    %cst_33 = arith.constant 0.000000e+00 : f32
    %63 = vector.broadcast %cst_33 : f32 to vector<16x32xf32>
    %64 = arith.maximumf %62, %63 : vector<16x32xf32>
    %c0_34 = arith.constant 0 : index
    %c0_35 = arith.constant 0 : index
    %65 = vector.load %arg9[%c0_34, %c0_35] : memref<32x16xf32, #tpu.memory_space<vmem>>, vector<32x16xf32>
    %cst_36 = arith.constant dense<0.000000e+00> : vector<16x16xf32>
    %66 = tpu.matmul %64, %65, %cst_36 {dimension_numbers = #tpu.dot_dimension_numbers<[1], [0], [0], [1], [0, 0, 1, 1], [], []>} : vector<16x32xf32>, vector<32x16xf32>, vector<16x16xf32> -> vector<16x16xf32>
    %67 = vector.broadcast %5 : vector<1x16xf32> to vector<16x16xf32>
    %68 = arith.addf %66, %67 : vector<16x16xf32>
    %cst_37 = arith.constant 0.000000e+00 : f32
    %69 = vector.broadcast %cst_37 : f32 to vector<16x16xf32>
    %70 = arith.maximumf %68, %69 : vector<16x16xf32>
    %71 = vector.broadcast %6 : vector<1x16xf32> to vector<16x16xf32>
    %72 = arith.mulf %70, %71 : vector<16x16xf32>
    %cst_38 = arith.constant dense<0.000000e+00> : vector<16xf32>
    %73 = vector.multi_reduction <add>, %72, %cst_38 [1] : vector<16x16xf32> to vector<16xf32>
    %74 = vector.shape_cast %73 : vector<16xf32> to vector<16x1xf32>
    %c2_39 = arith.constant 2 : index
    %75 = memref.load %arg0[%c2_39] : memref<3xf32, #tpu.memory_space<smem>>
    %76 = vector.broadcast %75 : f32 to vector<16x1xf32>
    %77 = arith.addf %74, %76 : vector<16x1xf32>
    %78 = vector.extract_strided_slice %43 {offsets = [32, 0], sizes = [16, 1], strides = [1, 1]} : vector<48x1xi32> to vector<16x1xi32>
    %c0_i32_40 = arith.constant 0 : i32
    %79 = vector.broadcast %c0_i32_40 : i32 to vector<16x1xi32>
    %80 = arith.cmpi sgt, %78, %79 : vector<16x1xi32>
    %81 = arith.extui %80 : vector<16x1xi1> to vector<16x1xi32>
    %82 = arith.sitofp %81 : vector<16x1xi32> to vector<16x1xf32>
    %83 = tpu.iota {dimensions = array<i32: 1>} : vector<16x2xi32>
    %c0_i32_41 = arith.constant 0 : i32
    %84 = vector.broadcast %c0_i32_41 : i32 to vector<16x2xi32>
    %85 = arith.cmpi eq, %83, %84 : vector<16x2xi32>
    %86 = arith.mulf %77, %82 : vector<16x1xf32>
    %87 = vector.shape_cast %86 : vector<16x1xf32> to vector<16x1xf32>
    %88 = vector.broadcast %87 : vector<16x1xf32> to vector<16x2xf32>
    %89 = vector.shape_cast %82 : vector<16x1xf32> to vector<16x1xf32>
    %90 = vector.broadcast %89 : vector<16x1xf32> to vector<16x2xf32>
    %91 = arith.select %85, %88, %90 : vector<16x2xi1>, vector<16x2xf32>
    %92 = tpu.iota {dimensions = array<i32: 0>} : vector<2x16xi32>
    %93 = tpu.iota {dimensions = array<i32: 1>} : vector<2x16xi32>
    %c8_i32 = arith.constant 8 : i32
    %94 = vector.broadcast %c8_i32 : i32 to vector<2x16xi32>
    %95 = arith.muli %92, %94 : vector<2x16xi32>
    %96 = arith.cmpi sge, %93, %95 : vector<2x16xi32>
    %c8_i32_42 = arith.constant 8 : i32
    %97 = vector.broadcast %c8_i32_42 : i32 to vector<2x16xi32>
    %98 = arith.addi %95, %97 : vector<2x16xi32>
    %99 = arith.cmpi slt, %93, %98 : vector<2x16xi32>
    %100 = arith.andi %96, %99 : vector<2x16xi1>
    %101 = arith.extui %100 : vector<2x16xi1> to vector<2x16xi32>
    %102 = arith.sitofp %101 : vector<2x16xi32> to vector<2x16xf32>
    %cst_43 = arith.constant dense<0.000000e+00> : vector<2x2xf32>
    %103 = tpu.matmul %102, %91, %cst_43 {dimension_numbers = #tpu.dot_dimension_numbers<[1], [0], [0], [1], [0, 0, 1, 1], [], []>} : vector<2x16xf32>, vector<16x2xf32>, vector<2x2xf32> -> vector<2x2xf32>
    %c0_44 = arith.constant 0 : index
    %c0_45 = arith.constant 0 : index
    %104 = vector.load %arg10[%c0_44, %c0_45] : memref<2x2xf32, #tpu.memory_space<vmem>>, vector<2x2xf32>
    tpu.vector_store %arg10[%c0_44, %c0_45], %103 {strides = array<i32>} : memref<2x2xf32, #tpu.memory_space<vmem>>, vector<2x2xf32>,
    return
  }
}

</mosaic_0001>

<llo_original>
// kernel: tpu_custom_call.1
$region0: #{tpu_custom_call.1}
  #allocation0 [shape = 'u32[]', space=smem, size = 0x4, offset = 0x4, fixed_abs, tag = 'smem constant byte address 0x4 - core index']
  #allocation1 [shape = 'u32[72,128]{1,0:T(1,128)}', space=vmem, size = 0x9000, scoped, tag = 'internal scratch']
  %s0 = inlined_call_operand.vmem [shape: f32[3], index: 0, kind: input, shape index: {}]
  %s1 = inlined_call_operand.vmem [shape: bf16[32,32], index: 1, kind: input, shape index: {}]
  %s2 = inlined_call_operand.vmem [shape: bf16[32,16], index: 2, kind: input, shape index: {}]
  %s3 = inlined_call_operand.vmem [shape: f32[32,1], index: 3, kind: input, shape index: {}]
  %s4 = inlined_call_operand.vmem [shape: f32[16,32], index: 4, kind: input, shape index: {}]
  %s5 = inlined_call_operand.vmem [shape: f32[32,32], index: 5, kind: input, shape index: {}]
  %s6 = inlined_call_operand.vmem [shape: f32[5,32], index: 6, kind: input, shape index: {}]
  %s7 = inlined_call_operand.vmem [shape: s32[48,1], index: 7, kind: input, shape index: {}]
  %s8 = inlined_call_operand.vmem [shape: f32[96,32], index: 8, kind: input, shape index: {}]
  %s9 = inlined_call_operand.vmem [shape: f32[32,16], index: 9, kind: input, shape index: {}]
  %s10 = inlined_call_operand.hbm [shape: f32[2,2], index: 10, kind: output, shape index: {}]
  %s11 = sld [smem:[#allocation0]]
  $region54: #{tpu_custom_call.1} parent=0
    _
  %s13 = ssub.s32 1, %s11
  %s14 = scalar_select 0, %s13, %s11
  $region1: #{tpu_custom_call.1} parent=0
    #allocation2 [shape = 'u8[512]{0}', space=smem, size = 0x200, scoped, tag = 'input window, operand 0, single buffered']
    #allocation3 [shape = 's32[1]{0}', space=sflag, size = 0x4, scoped, tag = 'scoped memory for tpu_custom_call.1']
    #allocation4 [shape = 's32[1]{0}', space=sflag, size = 0x4, scoped, tag = 'scoped memory for tpu_custom_call.1']
    #allocation5 [shape = 'u8[1024]{0}', space=vmem, size = 0x400, scoped, tag = 'output window, operand 0, single buffered']
    %15 = vsyncpa [#allocation4], 0
    %16 = vsyncpa [#allocation3], 0
    // Predicated region
    $region2: #{tpu_custom_call.1} parent=1 // pred_check
      _
    $region3: #{tpu_custom_call.1} parent=1 // pred_check_branch
      %18 = sbr.rel (0) target = $region5
    $region4: #{tpu_custom_call.1} parent=1 // pred_region
      %20 = vsyncadd [#allocation4], 0
      %s22 = sshll.u32 %s0, 4
      %s23 = int_to_ptr.vmem [resolvable:$true] %s22
      %25 = dma.vmem_to_smem %s23, 16, [#allocation2], [#allocation4]
    $region5: #{tpu_custom_call.1} parent=1 // pred_fallthru
      _
    // Predicated region
    $region6: #{tpu_custom_call.1} parent=1 // pred_check
      _
    $region7: #{tpu_custom_call.1} parent=1 // pred_check_branch
      %27 = sbr.rel (0) target = $region9
    $region8: #{tpu_custom_call.1} parent=1 // pred_region
      _
    $region9: #{tpu_custom_call.1} parent=1 // pred_fallthru
      _
    // Predicated region
    $region10: #{tpu_custom_call.1} parent=1 // pred_check
      _
    $region11: #{tpu_custom_call.1} parent=1 // pred_check_branch
      %29 = sbr.rel (0) target = $region13
    $region12: #{tpu_custom_call.1} parent=1 // pred_region
      _
    $region13: #{tpu_custom_call.1} parent=1 // pred_fallthru
      _
    // Predicated region
    $region14: #{tpu_custom_call.1} parent=1 // pred_check
      _
    $region15: #{tpu_custom_call.1} parent=1 // pred_check_branch
      %31 = sbr.rel (0) target = $region17
    $region16: #{tpu_custom_call.1} parent=1 // pred_region
      _
    $region17: #{tpu_custom_call.1} parent=1 // pred_fallthru
      _
    // Predicated region
    $region18: #{tpu_custom_call.1} parent=1 // pred_check
      _
    $region19: #{tpu_custom_call.1} parent=1 // pred_check_branch
      %33 = sbr.rel (0) target = $region21
    $region20: #{tpu_custom_call.1} parent=1 // pred_region
      _
    $region21: #{tpu_custom_call.1} parent=1 // pred_fallthru
      _
    // Predicated region
    $region22: #{tpu_custom_call.1} parent=1 // pred_check
      _
    $region23: #{tpu_custom_call.1} parent=1 // pred_check_branch
      %35 = sbr.rel (0) target = $region25
    $region24: #{tpu_custom_call.1} parent=1 // pred_region
      _
    $region25: #{tpu_custom_call.1} parent=1 // pred_fallthru
      _
    // Predicated region
    $region26: #{tpu_custom_call.1} parent=1 // pred_check
      _
    $region27: #{tpu_custom_call.1} parent=1 // pred_check_branch
      %37 = sbr.rel (0) target = $region29
    $region28: #{tpu_custom_call.1} parent=1 // pred_region
      _
    $region29: #{tpu_custom_call.1} parent=1 // pred_fallthru
      _
    // Predicated region
    $region30: #{tpu_custom_call.1} parent=1 // pred_check
      _
    $region31: #{tpu_custom_call.1} parent=1 // pred_check_branch
      %39 = sbr.rel (0) target = $region33
    $region32: #{tpu_custom_call.1} parent=1 // pred_region
      _
    $region33: #{tpu_custom_call.1} parent=1 // pred_fallthru
      _
    // Predicated region
    $region34: #{tpu_custom_call.1} parent=1 // pred_check
      _
    $region35: #{tpu_custom_call.1} parent=1 // pred_check_branch
      %41 = sbr.rel (0) target = $region37
    $region36: #{tpu_custom_call.1} parent=1 // pred_region
      _
    $region37: #{tpu_custom_call.1} parent=1 // pred_fallthru
      _
    // Predicated region
    $region38: #{tpu_custom_call.1} parent=1 // pred_check
      _
    $region39: #{tpu_custom_call.1} parent=1 // pred_check_branch
      %43 = sbr.rel (0) target = $region41
    $region40: #{tpu_custom_call.1} parent=1 // pred_region
      _
    $region41: #{tpu_custom_call.1} parent=1 // pred_fallthru
      _
    // Predicated region
    $region42: #{tpu_custom_call.1} parent=1 // pred_check
      _
    $region43: #{tpu_custom_call.1} parent=1 // pred_check_branch
      %45 = sbr.rel (0) target = $region45
    $region44: #{tpu_custom_call.1} parent=1 // pred_region
      %47 = dma.done [#allocation4], 16
    $region45: #{tpu_custom_call.1} parent=1 // pred_fallthru
      _
    %48 = sfence
    %v50 = vld [vmem:[%s1] sm:$0xf]
    %v51 = vld [vmem:[%s1 + $0x4] sm:$0xf]
    %v52 = vld [vmem:[%s1 + $0x8] sm:$0xf]
    %v53 = vld [vmem:[%s1 + $0xc] sm:$0xf]
    %v54 = vld [vmem:[%s3] sm:$0xff]
    %v55 = vld [vmem:[%s3 + $0x8] sm:$0xff]
    %v56 = vld [vmem:[%s3 + $0x10] sm:$0xff]
    %v57 = vld [vmem:[%s3 + $0x18] sm:$0xff]
    %v58 = vld [vmem:[%s6] sm:$0x1]
    %v59 = vld [vmem:[%s6 + $0x1] sm:$0x1]
    %v60 = vld [vmem:[%s6 + $0x2] sm:$0x1]
    %v61 = vld [vmem:[%s6 + $0x3] sm:$0x1]
    %v62 = vld [vmem:[%s6 + $0x4] sm:$0x1]
    %v63 = vld [vmem:[%s2] sm:$0xf]
    %v64 = vld [vmem:[%s2 + $0x4] sm:$0xf]
    %v65 = vld [vmem:[%s2 + $0x8] sm:$0xf]
    %v66 = vld [vmem:[%s2 + $0xc] sm:$0xf]
    %v71 = vunpack.c.l.b16 %v50
    %v72 = vunpack.c.l.b16 %v51
    %v73 = vunpack.c.l.b16 %v52
    %v74 = vunpack.c.l.b16 %v53
    %v75 = vpack.c.b16 %v72, %v71
    %v76 = vpack.c.b16 %v74, %v73
    %v81 = vunpack.c.l.b16 %v63
    %v82 = vunpack.c.l.b16 %v64
    %v83 = vunpack.c.l.b16 %v65
    %v84 = vunpack.c.l.b16 %v66
    %v85 = vpack.c.b16 %v82, %v81
    %v86 = vpack.c.b16 %v84, %v83
    %vm89 = vcmask 261120
    %v91 = vsel %vm89, %v75, 0
    %v94 = vsel %vm89, %v76, 0
    %96 = vmatpush.bf16.msra.mxu0 0
    %97 = vmatpush.bf16.msra.mxu0 0
    %98 = vmatpush.bf16.msra.mxu0 0
    %99 = vmatpush.bf16.msra.mxu0 0
    %100 = vmatpush.bf16.msra.mxu0 0
    %101 = vmatpush.bf16.msra.mxu0 0
    %102 = vmatpush.bf16.msra.mxu0 %v86
    %103 = vmatpush.bf16.msra.mxu0 %v85
    %104 = vmatmul.bf16.gmra.mxu0 %v91
    %v105 = vpop.f32.mrf.mxu0
    %v106 = vadd.f32 0.0, %v105
    %v107 = vpop.f32.mrf.mxu0
    %v108 = vadd.f32 0.0, %v107
    %109 = vmatmul.bf16.gmra.mxu0 %v94
    %v110 = vpop.f32.mrf.mxu0
    %v111 = vadd.f32 0.0, %v110
    %v112 = vpop.f32.mrf.mxu0
    %v113 = vadd.f32 0.0, %v112
    %114 = vdwg.mxu0
    %116 = vset.pattern.permute.xlu0 0
    %117 = vperm.xlu0 %116, %v54
    %v118 = vpop.permute.xlu0 %117
    %121 = vset.pattern.permute.xlu0 0
    %122 = vperm.xlu0 %121, %v55
    %v123 = vpop.permute.xlu0 %122
    %126 = vset.pattern.permute.xlu0 0
    %127 = vperm.xlu0 %126, %v56
    %v128 = vpop.permute.xlu0 %127
    %131 = vset.pattern.permute.xlu0 0
    %132 = vperm.xlu0 %131, %v57
    %v133 = vpop.permute.xlu0 %132
    %v135 = vmul.f32 %v106, %v118
    %v136 = vmul.f32 %v108, %v123
    %v137 = vmul.f32 %v111, %v128
    %v138 = vmul.f32 %v113, %v133
    %s139 = sld [smem:[#allocation2]]
    %s140 = sadd.f32 %s139, 1.0
    %v141 = vunpack.c.l.bf16 %v63
    %v142 = vunpack.c.l.bf16 %v64
    %v143 = vunpack.c.l.bf16 %v65
    %v144 = vunpack.c.l.bf16 %v66
    %v145 = vstv %s140
    %v146 = vmul.f32 %v145, %v141
    %v147 = vmul.f32 %v145, %v142
    %v148 = vmul.f32 %v145, %v143
    %v149 = vmul.f32 %v145, %v144
    %v150 = vadd.f32 %v146, %v135
    %v151 = vadd.f32 %v147, %v136
    %v152 = vadd.f32 %v148, %v137
    %v153 = vadd.f32 %v149, %v138
    %v154 = vld [vmem:[%s4] sm:$0xff]
    %v155 = vld [vmem:[%s4 + $0x8] sm:$0xff]
    %v156 = vperm.slane %v58, 0
    %vm157 = vcmask 130048
    %v159 = vsel %vm157, %v150, 0
    %v162 = vsel %vm157, %v151, 0
    %v165 = vsel %vm157, %v152, 0
    %v168 = vsel %vm157, %v153, 0
    %170 = vmatpush.msra.mxu0 0.0
    %171 = vmatpush.msra.mxu0 0.0
    %172 = vmatpush.msra.mxu0 0.0
    %173 = vmatpush.msra.mxu0 0.0
    %174 = vmatpush.msra.mxu0 0.0
    %175 = vmatpush.msra.mxu0 0.0
    %176 = vmatpush.msra.mxu0 0.0
    %177 = vmatpush.msra.mxu0 0.0
    %178 = vmatpush.msra.mxu0 0.0
    %179 = vmatpush.msra.mxu0 0.0
    %180 = vmatpush.msra.mxu0 0.0
    %181 = vmatpush.msra.mxu0 0.0
    %182 = vmatpush.msra.mxu0 0.0
    %183 = vmatpush.msra.mxu0 0.0
    %184 = vmatpush.msra.mxu0 %v155
    %185 = vmatpush.msra.mxu0 %v154
    %186 = vmatmul.f32.gmra.mxu0 %v159
    %v187 = vpop.f32.mrf.mxu0
    %v188 = vadd.f32 %v156, %v187
    %189 = vmatmul.f32.gmra.mxu0 %v162
    %v190 = vpop.f32.mrf.mxu0
    %v191 = vadd.f32 %v156, %v190
    %192 = vmatmul.f32.gmra.mxu0 %v165
    %v193 = vpop.f32.mrf.mxu0
    %v194 = vadd.f32 %v156, %v193
    %195 = vmatmul.f32.gmra.mxu0 %v168
    %v196 = vpop.f32.mrf.mxu0
    %v197 = vadd.f32 %v156, %v196
    %198 = vdwg.mxu0
    %v199 = vmax.f32 %v188, 0.0
    %v200 = vmax.f32 %v191, 0.0
    %v201 = vmax.f32 %v194, 0.0
    %v202 = vmax.f32 %v197, 0.0
    %v203 = vpack.c.bf16 %v200, %v199
    %v204 = vpack.c.bf16 %v202, %v201
    %205 = vmatpush.bf16.msra.mxu0 0
    %206 = vmatpush.bf16.msra.mxu0 0
    %207 = vmatpush.bf16.msra.mxu0 0
    %208 = vmatpush.bf16.msra.mxu0 0
    %209 = vmatpush.bf16.msra.mxu0 0
    %210 = vmatpush.bf16.msra.mxu0 0
    %211 = vmatpush.bf16.msra.mxu0 %v204
    %212 = vmatpush.bf16.msra.mxu0 %v203
    %213 = vmatmul.bf16.gmra.mxu0 %v91
    %v214 = vpop.f32.mrf.mxu0
    %v215 = vadd.f32 0.0, %v214
    %v216 = vpop.f32.mrf.mxu0
    %v217 = vadd.f32 0.0, %v216
    %218 = vmatmul.bf16.gmra.mxu0 %v94
    %v219 = vpop.f32.mrf.mxu0
    %v220 = vadd.f32 0.0, %v219
    %v221 = vpop.f32.mrf.mxu0
    %v222 = vadd.f32 0.0, %v221
    %223 = vdwg.mxu0
    %v224 = vmul.f32 %v215, %v118
    %v225 = vmul.f32 %v217, %v123
    %v226 = vmul.f32 %v220, %v128
    %v227 = vmul.f32 %v222, %v133
    %s228 = sld [smem:[#allocation2 + $0x1]]
    %s229 = sadd.f32 %s228, 1.0
    %v230 = vstv %s229
    %v231 = vmul.f32 %v230, %v199
    %v232 = vmul.f32 %v230, %v200
    %v233 = vmul.f32 %v230, %v201
    %v234 = vmul.f32 %v230, %v202
    %v235 = vadd.f32 %v231, %v224
    %v236 = vadd.f32 %v232, %v225
    %v237 = vadd.f32 %v233, %v226
    %v238 = vadd.f32 %v234, %v227
    %v239 = vld [vmem:[%s5] sm:$0xff]
    %v240 = vld [vmem:[%s5 + $0x8] sm:$0xff]
    %v241 = vld [vmem:[%s5 + $0x10] sm:$0xff]
    %v242 = vld [vmem:[%s5 + $0x18] sm:$0xff]
    %v243 = vperm.slane %v59, 0
    %v245 = vsel %vm89, %v235, 0
    %v248 = vsel %vm89, %v236, 0
    %v251 = vsel %vm89, %v237, 0
    %v254 = vsel %vm89, %v238, 0
    %256 = vmatpush.msra.mxu0 0.0
    %257 = vmatpush.msra.mxu0 0.0
    %258 = vmatpush.msra.mxu0 0.0
    %259 = vmatpush.msra.mxu0 0.0
    %260 = vmatpush.msra.mxu0 0.0
    %261 = vmatpush.msra.mxu0 0.0
    %262 = vmatpush.msra.mxu0 0.0
    %263 = vmatpush.msra.mxu0 0.0
    %264 = vmatpush.msra.mxu0 0.0
    %265 = vmatpush.msra.mxu0 0.0
    %266 = vmatpush.msra.mxu0 0.0
    %267 = vmatpush.msra.mxu0 0.0
    %268 = vmatpush.msra.mxu0 %v242
    %269 = vmatpush.msra.mxu0 %v241
    %270 = vmatpush.msra.mxu0 %v240
    %271 = vmatpush.msra.mxu0 %v239
    %272 = vmatmul.f32.gmra.mxu0 %v245
    %v273 = vpop.f32.mrf.mxu0
    %v274 = vadd.f32 %v243, %v273
    %275 = vmatmul.f32.gmra.mxu0 %v248
    %v276 = vpop.f32.mrf.mxu0
    %v277 = vadd.f32 %v243, %v276
    %278 = vmatmul.f32.gmra.mxu0 %v251
    %v279 = vpop.f32.mrf.mxu0
    %v280 = vadd.f32 %v243, %v279
    %281 = vmatmul.f32.gmra.mxu0 %v254
    %v282 = vpop.f32.mrf.mxu0
    %v283 = vadd.f32 %v243, %v282
    %284 = vdwg.mxu0
    %v285 = vlaneseq
    %v286 = vshrl.u32 %v285, 7
    %v287 = vadd.s32 %v286, 8
    %v288 = vadd.s32 %v286, 16
    %v289 = vadd.s32 %v286, 24
    %vm290 = vcmp.ne.s32.totalorder %v286, 0
    %vm291 = vcmp.ne.s32.totalorder %v287, 0
    %vm292 = vcmp.ne.s32.totalorder %v288, 0
    %vm293 = vcmp.ne.s32.totalorder %v289, 0
    %v294 = vsel %vm290, 1, 0
    %v295 = vsel %vm291, 1, 0
    %v296 = vsel %vm292, 1, 0
    %v297 = vsel %vm293, 1, 0
    %v298 = vcvt.s32.f32 %v294
    %v299 = vcvt.s32.f32 %v295
    %v300 = vcvt.s32.f32 %v296
    %v301 = vcvt.s32.f32 %v297
    %v302 = vmul.f32 %v274, %v298
    %v303 = vmul.f32 %v277, %v299
    %v304 = vmul.f32 %v280, %v300
    %v305 = vmul.f32 %v283, %v301
    %v306 = vld [vmem:[%s7] sm:$0xff]
    %v307 = vld [vmem:[%s7 + $0x8] sm:$0xff]
    %v308 = vld [vmem:[%s7 + $0x10] sm:$0xff]
    %v309 = vld [vmem:[%s7 + $0x18] sm:$0xff]
    %v310 = vld [vmem:[%s7 + $0x20] sm:$0xff]
    %v311 = vld [vmem:[%s7 + $0x28] sm:$0xff]
    %v312 = vlaneseq
    %v313 = vand.u32 %v312, 127
    %314 = vset.pattern.permute.xlu0 0
    %315 = vperm.xlu0 %314, %v306
    %v316 = vpop.permute.xlu0 %315
    %317 = vset.pattern.permute.xlu0 0
    %318 = vperm.xlu0 %317, %v307
    %v319 = vpop.permute.xlu0 %318
    %320 = vset.pattern.permute.xlu0 0
    %321 = vperm.xlu0 %320, %v308
    %v322 = vpop.permute.xlu0 %321
    %323 = vset.pattern.permute.xlu0 0
    %324 = vperm.xlu0 %323, %v309
    %v325 = vpop.permute.xlu0 %324
    %326 = vset.pattern.permute.xlu0 0
    %327 = vperm.xlu0 %326, %v310
    %v328 = vpop.permute.xlu0 %327
    %329 = vset.pattern.permute.xlu0 0
    %330 = vperm.xlu0 %329, %v311
    %v331 = vpop.permute.xlu0 %330
    %vm332 = vcmp.eq.s32.totalorder %v316, %v313
    %vm333 = vcmp.eq.s32.totalorder %v319, %v313
    %vm334 = vcmp.eq.s32.totalorder %v322, %v313
    %vm335 = vcmp.eq.s32.totalorder %v325, %v313
    %vm336 = vcmp.eq.s32.totalorder %v328, %v313
    %vm337 = vcmp.eq.s32.totalorder %v331, %v313
    %v338 = vsel %vm332, 1, 0
    %v339 = vsel %vm333, 1, 0
    %v340 = vsel %vm334, 1, 0
    %v341 = vsel %vm335, 1, 0
    %v342 = vsel %vm336, 1, 0
    %v343 = vsel %vm337, 1, 0
    %v344 = vcvt.s32.f32 %v338
    %v345 = vcvt.s32.f32 %v339
    %v346 = vcvt.s32.f32 %v340
    %v347 = vcvt.s32.f32 %v341
    %v348 = vcvt.s32.f32 %v342
    %v349 = vcvt.s32.f32 %v343
    %v351 = vsel %vm89, %v344, 0
    %v354 = vsel %vm89, %v345, 0
    %v357 = vsel %vm89, %v346, 0
    %v360 = vsel %vm89, %v347, 0
    %v363 = vsel %vm89, %v348, 0
    %v366 = vsel %vm89, %v349, 0
    %368 = vmatpush.msra.mxu0 0.0
    %369 = vmatpush.msra.mxu0 0.0
    %370 = vmatpush.msra.mxu0 0.0
    %371 = vmatpush.msra.mxu0 0.0
    %372 = vmatpush.msra.mxu0 0.0
    %373 = vmatpush.msra.mxu0 0.0
    %374 = vmatpush.msra.mxu0 0.0
    %375 = vmatpush.msra.mxu0 0.0
    %376 = vmatpush.msra.mxu0 0.0
    %377 = vmatpush.msra.mxu0 0.0
    %378 = vmatpush.msra.mxu0 0.0
    %379 = vmatpush.msra.mxu0 0.0
    %380 = vmatpush.msra.mxu0 %v305
    %381 = vmatpush.msra.mxu0 %v304
    %382 = vmatpush.msra.mxu0 %v303
    %383 = vmatpush.msra.mxu0 %v302
    %384 = vmatmul.f32.gmra.mxu0 %v351
    %v385 = vpop.f32.mrf.mxu0
    %v386 = vadd.f32 0.0, %v385
    %387 = vmatmul.f32.gmra.mxu0 %v354
    %v388 = vpop.f32.mrf.mxu0
    %v389 = vadd.f32 0.0, %v388
    %390 = vmatmul.f32.gmra.mxu0 %v357
    %v391 = vpop.f32.mrf.mxu0
    %v392 = vadd.f32 0.0, %v391
    %393 = vmatmul.f32.gmra.mxu0 %v360
    %v394 = vpop.f32.mrf.mxu0
    %v395 = vadd.f32 0.0, %v394
    %396 = vmatmul.f32.gmra.mxu0 %v363
    %v397 = vpop.f32.mrf.mxu0
    %v398 = vadd.f32 0.0, %v397
    %399 = vmatmul.f32.gmra.mxu0 %v366
    %v400 = vpop.f32.mrf.mxu0
    %v401 = vadd.f32 0.0, %v400
    %402 = vdwg.mxu0
    %v403 = vld [vmem:[%s8] sm:$0xff]
    %v404 = vld [vmem:[%s8 + $0x8] sm:$0xff]
    %v405 = vld [vmem:[%s8 + $0x10] sm:$0xff]
    %v406 = vld [vmem:[%s8 + $0x18] sm:$0xff]
    %v407 = vld [vmem:[%s8 + $0x20] sm:$0xff]
    %v408 = vld [vmem:[%s8 + $0x28] sm:$0xff]
    %v409 = vld [vmem:[%s8 + $0x30] sm:$0xff]
    %v410 = vld [vmem:[%s8 + $0x38] sm:$0xff]
    %v412 = vsel %vm89, %v392, 0
    %v415 = vsel %vm89, %v395, 0
    %417 = vmatpush.msra.mxu0 0.0
    %418 = vmatpush.msra.mxu0 0.0
    %419 = vmatpush.msra.mxu0 0.0
    %420 = vmatpush.msra.mxu0 0.0
    %421 = vmatpush.msra.mxu0 0.0
    %422 = vmatpush.msra.mxu0 0.0
    %423 = vmatpush.msra.mxu0 0.0
    %424 = vmatpush.msra.mxu0 0.0
    %425 = vmatpush.msra.mxu0 0.0
    %426 = vmatpush.msra.mxu0 0.0
    %427 = vmatpush.msra.mxu0 0.0
    %428 = vmatpush.msra.mxu0 0.0
    %429 = vmatpush.msra.mxu0 %v410
    %430 = vmatpush.msra.mxu0 %v409
    %431 = vmatpush.msra.mxu0 %v408
    %432 = vmatpush.msra.mxu0 %v407
    %433 = vmatmul.f32.gmra.mxu0 %v412
    %v434 = vpop.f32.mrf.mxu0
    %v435 = vadd.f32 0.0, %v434
    %436 = vmatmul.f32.gmra.mxu0 %v415
    %v437 = vpop.f32.mrf.mxu0
    %v438 = vadd.f32 0.0, %v437
    %439 = vdwg.mxu0
    %v441 = vsel %vm89, %v386, 0
    %v444 = vsel %vm89, %v389, 0
    %446 = vmatpush.msra.mxu0 0.0
    %447 = vmatpush.msra.mxu0 0.0
    %448 = vmatpush.msra.mxu0 0.0
    %449 = vmatpush.msra.mxu0 0.0
    %450 = vmatpush.msra.mxu0 0.0
    %451 = vmatpush.msra.mxu0 0.0
    %452 = vmatpush.msra.mxu0 0.0
    %453 = vmatpush.msra.mxu0 0.0
    %454 = vmatpush.msra.mxu0 0.0
    %455 = vmatpush.msra.mxu0 0.0
    %456 = vmatpush.msra.mxu0 0.0
    %457 = vmatpush.msra.mxu0 0.0
    %458 = vmatpush.msra.mxu0 %v406
    %459 = vmatpush.msra.mxu0 %v405
    %460 = vmatpush.msra.mxu0 %v404
    %461 = vmatpush.msra.mxu0 %v403
    %462 = vmatmul.f32.gmra.mxu0 %v441
    %v463 = vpop.f32.mrf.mxu0
    %v464 = vadd.f32 %v435, %v463
    %465 = vmatmul.f32.gmra.mxu0 %v444
    %v466 = vpop.f32.mrf.mxu0
    %v467 = vadd.f32 %v438, %v466
    %468 = vdwg.mxu0
    %v469 = vld [vmem:[%s8 + $0x40] sm:$0xff]
    %v470 = vld [vmem:[%s8 + $0x48] sm:$0xff]
    %v471 = vld [vmem:[%s8 + $0x50] sm:$0xff]
    %v472 = vld [vmem:[%s8 + $0x58] sm:$0xff]
    %v474 = vsel %vm89, %v398, 0
    %v477 = vsel %vm89, %v401, 0
    %479 = vmatpush.msra.mxu0 0.0
    %480 = vmatpush.msra.mxu0 0.0
    %481 = vmatpush.msra.mxu0 0.0
    %482 = vmatpush.msra.mxu0 0.0
    %483 = vmatpush.msra.mxu0 0.0
    %484 = vmatpush.msra.mxu0 0.0
    %485 = vmatpush.msra.mxu0 0.0
    %486 = vmatpush.msra.mxu0 0.0
    %487 = vmatpush.msra.mxu0 0.0
    %488 = vmatpush.msra.mxu0 0.0
    %489 = vmatpush.msra.mxu0 0.0
    %490 = vmatpush.msra.mxu0 0.0
    %491 = vmatpush.msra.mxu0 %v472
    %492 = vmatpush.msra.mxu0 %v471
    %493 = vmatpush.msra.mxu0 %v470
    %494 = vmatpush.msra.mxu0 %v469
    %495 = vmatmul.f32.gmra.mxu0 %v474
    %v496 = vpop.f32.mrf.mxu0
    %v497 = vadd.f32 0.0, %v496
    %498 = vmatmul.f32.gmra.mxu0 %v477
    %v499 = vpop.f32.mrf.mxu0
    %v500 = vadd.f32 0.0, %v499
    %501 = vdwg.mxu0
    %v502 = vadd.f32 %v464, %v497
    %v503 = vadd.f32 %v467, %v500
    %v504 = vperm.slane %v60, 0
    %v505 = vadd.f32 %v502, %v504
    %v506 = vadd.f32 %v503, %v504
    %v507 = vmax.f32 %v505, 0.0
    %v508 = vmax.f32 %v506, 0.0
    %v509 = vld [vmem:[%s9] sm:$0xff]
    %v510 = vld [vmem:[%s9 + $0x8] sm:$0xff]
    %v511 = vld [vmem:[%s9 + $0x10] sm:$0xff]
    %v512 = vld [vmem:[%s9 + $0x18] sm:$0xff]
    %v513 = vperm.slane %v61, 0
    %v515 = vsel %vm89, %v507, 0
    %v518 = vsel %vm89, %v508, 0
    %520 = vmatpush.msra.mxu0 0.0
    %521 = vmatpush.msra.mxu0 0.0
    %522 = vmatpush.msra.mxu0 0.0
    %523 = vmatpush.msra.mxu0 0.0
    %524 = vmatpush.msra.mxu0 0.0
    %525 = vmatpush.msra.mxu0 0.0
    %526 = vmatpush.msra.mxu0 0.0
    %527 = vmatpush.msra.mxu0 0.0
    %528 = vmatpush.msra.mxu0 0.0
    %529 = vmatpush.msra.mxu0 0.0
    %530 = vmatpush.msra.mxu0 0.0
    %531 = vmatpush.msra.mxu0 0.0
    %532 = vmatpush.msra.mxu0 %v512
    %533 = vmatpush.msra.mxu0 %v511
    %534 = vmatpush.msra.mxu0 %v510
    %535 = vmatpush.msra.mxu0 %v509
    %536 = vmatmul.f32.gmra.mxu0 %v515
    %v537 = vpop.f32.mrf.mxu0
    %v538 = vadd.f32 %v513, %v537
    %539 = vmatmul.f32.gmra.mxu0 %v518
    %v540 = vpop.f32.mrf.mxu0
    %v541 = vadd.f32 %v513, %v540
    %542 = vdwg.mxu0
    %v543 = vmax.f32 %v538, 0.0
    %v544 = vmax.f32 %v541, 0.0
    %v545 = vperm.slane %v62, 0
    %v546 = vmul.f32 %v543, %v545
    %v547 = vmul.f32 %v544, %v545
    %v548 = vsel %vm157, %v546, 0.0
    %549 = vadd.xlane.f32.xlu0 %v548
    %v550 = vpop.xlane.xlu0 %549
    %v551 = vsel %vm157, %v547, 0.0
    %552 = vadd.xlane.f32.xlu0 %v551
    %v553 = vpop.xlane.xlu0 %552
    %s554 = sld [smem:[#allocation2 + $0x2]]
    %v555 = vstv %s554
    %v556 = vadd.f32 %v550, %v555
    %v557 = vadd.f32 %v553, %v555
    %vm558 = vcmp.gt.s32.totalorder %v310, 0
    %vm559 = vcmp.gt.s32.totalorder %v311, 0
    %v560 = vsel %vm558, 1, 0
    %v561 = vsel %vm559, 1, 0
    %v562 = vcvt.s32.f32 %v560
    %v563 = vcvt.s32.f32 %v561
    %vm564 = vcmp.eq.s32.totalorder %v313, 0
    %v565 = vmul.f32 %v556, %v562
    %v566 = vmul.f32 %v557, %v563
    %568 = vset.pattern.permute.xlu0 0
    %569 = vperm.xlu0 %568, %v565
    %v570 = vpop.permute.xlu0 %569
    %573 = vset.pattern.permute.xlu0 0
    %574 = vperm.xlu0 %573, %v566
    %v575 = vpop.permute.xlu0 %574
    %578 = vset.pattern.permute.xlu0 0
    %579 = vperm.xlu0 %578, %v562
    %v580 = vpop.permute.xlu0 %579
    %583 = vset.pattern.permute.xlu0 0
    %584 = vperm.xlu0 %583, %v563
    %v585 = vpop.permute.xlu0 %584
    %v587 = vsel %vm564, %v570, %v580
    %v588 = vsel %vm564, %v575, %v585
    %v589 = vmul.u32 %v286, 8
    %vm590 = vcmp.ge.s32.totalorder %v313, %v589
    %v591 = vadd.s32 %v589, 8
    %vm592 = vcmp.lt.s32.totalorder %v313, %v591
    %vm593 = vmand %vm590, %vm592
    %v594 = vsel %vm593, 1, 0
    %v595 = vcvt.s32.f32 %v594
    %v597 = vsel %vm157, %v595, 0
    %599 = vmatpush.msra.mxu0 0.0
    %600 = vmatpush.msra.mxu0 0.0
    %601 = vmatpush.msra.mxu0 0.0
    %602 = vmatpush.msra.mxu0 0.0
    %603 = vmatpush.msra.mxu0 0.0
    %604 = vmatpush.msra.mxu0 0.0
    %605 = vmatpush.msra.mxu0 0.0
    %606 = vmatpush.msra.mxu0 0.0
    %607 = vmatpush.msra.mxu0 0.0
    %608 = vmatpush.msra.mxu0 0.0
    %609 = vmatpush.msra.mxu0 0.0
    %610 = vmatpush.msra.mxu0 0.0
    %611 = vmatpush.msra.mxu0 0.0
    %612 = vmatpush.msra.mxu0 0.0
    %613 = vmatpush.msra.mxu0 %v588
    %614 = vmatpush.msra.mxu0 %v587
    %615 = vmatmul.f32.gmra.mxu0 %v597
    %v616 = vpop.f32.mrf.mxu0
    %v617 = vadd.f32 0.0, %v616
    %618 = vdwg.mxu0
    %vm619 = vcmask 9216
    %620 = vst.msk [vmem:[#allocation5] sm:$0x3] %vm619, %v617
    // Predicated region
    $region46: #{tpu_custom_call.1} parent=1 // pred_check
      _
    $region47: #{tpu_custom_call.1} parent=1 // pred_check_branch
      %622 = sbr.rel (0) target = $region49
    $region48: #{tpu_custom_call.1} parent=1 // pred_region
      %624 = vsyncadd [#allocation3], 0
      %s626 = sshll.u32 [#allocation5], 4
      %s627 = int_to_ptr.vmem [resolvable:$true] %s626
      %s628 = sshll.u32 %s10, 4
      %s629 = int_to_ptr.hbm [resolvable:$true] %s628
      %631 = dma.vmem_to_hbm [thread:$0]  %s627, 32, %s629, [#allocation3]
    $region49: #{tpu_custom_call.1} parent=1 // pred_fallthru
      _
    // Predicated region
    $region50: #{tpu_custom_call.1} parent=1 // pred_check
      _
    $region51: #{tpu_custom_call.1} parent=1 // pred_check_branch
      %633 = sbr.rel (0) target = $region53
    $region52: #{tpu_custom_call.1} parent=1 // pred_region
      %635 = dma.done [#allocation3], 32
    $region53: #{tpu_custom_call.1} parent=1 // pred_fallthru
      _
    %636 = vsyncpa [#allocation3], 1
    %637 = vsyncpa [#allocation4], 1

</llo_original>
